<compile_context>
chip_gen: v7x
topology: tpu7x:2x2x1
jax: 0.10.0
libtpu: 0.0.40
codegen_flags: <defaults>
</compile_context>

<pallas_src>
import jax
import jax.numpy as jnp
from jax import lax
from jax.experimental import pallas as pl
from jax.experimental.pallas import tpu as pltpu


def _round_up(x, m):
    return ((x + m - 1) // m) * m


# ----------------------------------------------------------------------------
# Kernel: one MXU matmul (weights+bias) x (pre-packed patches) per batch step.
# ----------------------------------------------------------------------------
def _conv3x3_matmul_kernel(w_ref, x_ref, o_ref):
    # w_ref: (M_PAD, K_PAD)      compute dtype, resident (constant index_map);
    #                            last column is the folded bias.
    # x_ref: (1, K_PAD, L_PAD)   compute dtype, pre-packed im2col patches for
    #                            this batch element; row K-1 is all ones.
    # o_ref: (1, M_PAD, L_PAD)   lane-dense output (L_PAD multiple of 128).
    o_ref[0] = jnp.dot(
        w_ref[...], x_ref[0], preferred_element_type=jnp.float32
    ).astype(o_ref.dtype)


def conv3x3_same_mxu(image, conv_w, conv_b, *,
                     compute_dtype=jnp.bfloat16, out_dtype=jnp.float32):
    """3x3 conv, stride 1, zero padding 1, NCHW (PyTorch Conv2d semantics)."""
    n, cin, h, w = image.shape
    cout = conv_w.shape[0]
    k = 9 * cin + 1                       # 9 taps * cin channels + bias row
    k_pad = _round_up(k, 16)              # bf16 sublane packing (f32-safe too)
    m_pad = _round_up(cout, 8)
    l_out = h * w
    l_pad = _round_up(l_out, 128)         # lane-dense, unmasked output stores

    # im2col in the wrapper (cheap XLA glue at these sizes): 1-px zero halo,
    # 9 statically shifted views stacked as rows ordered (kh, kw, ci) to match
    # the weight reshape, plus a constant-1 row that carries the folded bias.
    g = jnp.pad(image, ((0, 0), (0, 0), (1, 1), (1, 1)))
    taps = [g[:, :, kh:kh + h, kw:kw + w]
            for kh in range(3) for kw in range(3)]
    patches = jnp.stack(taps, axis=1).reshape(n, 9 * cin, l_out)
    patches = jnp.concatenate(
        [patches, jnp.ones((n, 1, l_out), patches.dtype)], axis=1)
    patches = jnp.pad(patches, ((0, 0), (0, k_pad - k), (0, l_pad - l_out)))
    patches = patches.astype(compute_dtype)
    # TODO(synk): at realistic gel-image sizes pre-materialized im2col inflates
    # HBM traffic ~k_pad/cin x; switch to in-kernel im2col with a sublane-
    # friendly 2-D layout (kh via sublane shift, kw via pltpu.roll on a
    # resident slab), block the spatial axis with an overlapping halo, and set
    # vmem_limit_bytes explicitly (v7x: 64 MiB physical / 32 MiB default).

    # Weights -> (Cout, 9*Cin) with columns ordered (kh, kw, ci), bias folded
    # in as an extra column, zero padded to the MXU-friendly (M_PAD, K_PAD).
    w2d = conv_w.transpose(0, 2, 3, 1).reshape(cout, 9 * cin)
    w2d = jnp.concatenate([w2d, conv_b.reshape(cout, 1)], axis=1)
    w2d = jnp.pad(w2d, ((0, m_pad - cout), (0, k_pad - k))).astype(compute_dtype)

    out_flat = pl.pallas_call(
        _conv3x3_matmul_kernel,
        out_shape=jax.ShapeDtypeStruct((n, m_pad, l_pad), out_dtype),
        grid=(n,),
        in_specs=[
            pl.BlockSpec((m_pad, k_pad), lambda i: (0, 0)),       # weights (resident)
            pl.BlockSpec((1, k_pad, l_pad), lambda i: (i, 0, 0)),  # patches (per batch)
        ],
        out_specs=pl.BlockSpec((1, m_pad, l_pad), lambda i: (i, 0, 0)),
        compiler_params=pltpu.CompilerParams(
            dimension_semantics=("parallel",)),
    )(w2d, patches)

    # Drop channel / lane padding and restore NCHW (cheap XLA glue).
    return out_flat[:, :cout, :l_out].reshape(n, cout, h, w)


# ----------------------------------------------------------------------------
# ModelWithSymmetricPadding.forward semantics
# ----------------------------------------------------------------------------
def symmetric_pad(image):
    _, _, h, w = image.shape
    new_h = 32 * (h // 32 + 1)
    new_w = 32 * (w // 32 + 1)
    pad_top = (new_h - h) // 2
    pad_bottom = new_h - h - pad_top
    pad_left = (new_w - w) // 2
    pad_right = new_w - w - pad_left
    padded = jnp.pad(
        image,
        ((0, 0), (0, 0), (pad_top, pad_bottom), (pad_left, pad_right)),
        mode="constant", constant_values=0.0)
    return padded, (h, w, pad_top, pad_bottom, pad_left, pad_right)


def symmetric_unpad(image, original_dimensions):
    h, w, pad_top, pad_bottom, pad_left, pad_right = original_dimensions
    return image[:, :, pad_top:h + pad_top, pad_left:w + pad_left]


def model_with_symmetric_padding(image, conv_w, conv_b, *,
                                 compute_dtype=jnp.bfloat16,
                                 out_dtype=jnp.float32):
    """Forward of ModelWithSymmetricPadding with the stand-in 3x3 conv model.

    symmetric_pad adds >= 8 rows/cols of zeros on every side and
    symmetric_unpad removes them again; for a 1-px-halo 3x3 conv the surviving
    h x w region is identical to running the conv on the original image with a
    single 1-px zero halo, so the redundant padded compute and the crop copy
    are skipped (validated against the full padded reference below).
    """
    # TODO(synk): a real wrapped UNet (multi-scale) still needs the padded-to-32
    # input; in that case run conv3x3_same_mxu (it is size-agnostic) on
    # symmetric_pad(image)[0] and symmetric_unpad the result.
    return conv3x3_same_mxu(image, conv_w, conv_b,
                            compute_dtype=compute_dtype, out_dtype=out_dtype)


# ----------------------------------------------------------------------------
# Pure-JAX reference of the full module forward (pad -> conv -> unpad).
# ----------------------------------------------------------------------------
def reference_forward(image, conv_w, conv_b):
    padded, dims = symmetric_pad(image)
    out = lax.conv_general_dilated(
        padded, conv_w, window_strides=(1, 1), padding=((1, 1), (1, 1)),
        dimension_numbers=("NCHW", "OIHW", "NCHW"))
    out = out + conv_b[None, :, None, None]
    return symmetric_unpad(out, dims)


if __name__ == "__main__":
    key = jax.random.PRNGKey(0)
    k_x, k_w, k_b = jax.random.split(key, 3)

    N, C, H, W = 2, 4, 16, 16          # input: [2, 4, 16, 16] NCHW
    C_OUT = 4

    x = jax.random.normal(k_x, (N, C, H, W), dtype=jnp.float32)
    conv_w = 0.1 * jax.random.normal(k_w, (C_OUT, C, 3, 3), dtype=jnp.float32)
    conv_b = 0.05 * jax.random.normal(k_b, (C_OUT,), dtype=jnp.float32)

    fwd = jax.jit(model_with_symmetric_padding,
                  static_argnames=("compute_dtype", "out_dtype"))

    ref = jax.block_until_ready(reference_forward(x, conv_w, conv_b))

    # f32 compute path: matches the padded lax.conv reference (tolerance leaves
    # headroom for MXU f32 rounding vs. XLA's conv accumulation order).
    out_f32 = jax.block_until_ready(
        fwd(x, conv_w, conv_b, compute_dtype=jnp.float32))
    assert out_f32.shape == (N, C_OUT, H, W), out_f32.shape
    assert jnp.allclose(out_f32, ref, atol=1e-2, rtol=1e-2), float(
        jnp.max(jnp.abs(out_f32 - ref)))

    # bf16 inputs / f32 accumulation (default; the v6e/v7x MXU path, bf16 never
    # touches the VPU so it is also v5e-safe).  Looser tolerance: input quant.
    out_bf16 = jax.block_until_ready(
        fwd(x, conv_w, conv_b, compute_dtype=jnp.bfloat16))
    assert out_bf16.shape == (N, C_OUT, H, W), out_bf16.shape
    assert jnp.allclose(out_bf16, ref, atol=6e-2, rtol=6e-2), float(
        jnp.max(jnp.abs(out_bf16 - ref)))

    print("KERNEL_OK")
</pallas_src>

<mosaic_0001>
module attributes {stable_mosaic.version = 11 : i64} {
  func.func @_conv3x3_matmul_kernel(%arg0: i32, %arg1: memref<8x48xf32, #tpu.memory_space<vmem>>, %arg2: memref<1x48x256xf32, #tpu.memory_space<vmem>>, %arg3: memref<1x8x256xf32, #tpu.memory_space<vmem>>) attributes {dimension_semantics = [#tpu.dimension_semantics<parallel>], iteration_bounds = array<i64: 2>, scalar_prefetch = 0 : i64, scratch_operands = 0 : i64, tpu.core_type = #tpu.core_type<tc>, window_params = [{pipeline_mode = #tpu.pipeline_mode<synchronous>, transform_indices = @transform_0, window_bounds = array<i64: 8, 48>}, {transform_indices = @transform_1, window_bounds = array<i64: 1, 48, 256>}, {transform_indices = @transform_2, window_bounds = array<i64: 1, 8, 256>}]} {
    %c0 = arith.constant 0 : index
    %c0_0 = arith.constant 0 : index
    %0 = vector.load %arg1[%c0, %c0_0] : memref<8x48xf32, #tpu.memory_space<vmem>>, vector<8x48xf32>
    %c0_1 = arith.constant 0 : index
    %c0_2 = arith.constant 0 : index
    %c0_3 = arith.constant 0 : index
    %1 = vector.load %arg2[%c0_1, %c0_2, %c0_3] : memref<1x48x256xf32, #tpu.memory_space<vmem>>, vector<1x48x256xf32>
    %2 = vector.shape_cast %1 : vector<1x48x256xf32> to vector<48x256xf32>
    %cst = arith.constant dense<0.000000e+00> : vector<8x256xf32>
    %3 = tpu.matmul %0, %2, %cst {dimension_numbers = #tpu.dot_dimension_numbers<[1], [0], [0], [1], [0, 0, 1, 1], [], []>} : vector<8x48xf32>, vector<48x256xf32>, vector<8x256xf32> -> vector<8x256xf32>
    %c0_4 = arith.constant 0 : index
    %c0_5 = arith.constant 0 : index
    %c0_6 = arith.constant 0 : index
    %4 = vector.load %arg3[%c0_4, %c0_5, %c0_6] : memref<1x8x256xf32, #tpu.memory_space<vmem>>, vector<1x8x256xf32>
    %5 = vector.shape_cast %4 : vector<1x8x256xf32> to vector<8x256xf32>
    %6 = vector.shape_cast %3 : vector<8x256xf32> to vector<1x8x256xf32>
    tpu.vector_store %arg3[%c0_4, %c0_5, %c0_6], %6 {strides = array<i32>} : memref<1x8x256xf32, #tpu.memory_space<vmem>>, vector<1x8x256xf32>,
    return
  }
  func.func @transform_0(%arg0: i32) -> (i32, i32) {
    %c0_i32 = arith.constant 0 : i32
    %c0_i32_0 = arith.constant 0 : i32
    %c0_i32_1 = arith.constant 0 : i32
    return %c0_i32, %c0_i32_0 : i32, i32
  }
  func.func @transform_1(%arg0: i32) -> (i32, i32, i32) {
    %c0_i32 = arith.constant 0 : i32
    %c0_i32_0 = arith.constant 0 : i32
    %c0_i32_1 = arith.constant 0 : i32
    return %arg0, %c0_i32, %c0_i32_0 : i32, i32, i32
  }
  func.func @transform_2(%arg0: i32) -> (i32, i32, i32) {
    %c0_i32 = arith.constant 0 : i32
    %c0_i32_0 = arith.constant 0 : i32
    %c0_i32_1 = arith.constant 0 : i32
    return %arg0, %c0_i32, %c0_i32_0 : i32, i32, i32
  }
}

</mosaic_0001>

<llo_original>
// kernel: model_with_symmetric_padding.1
$region0: #{model_with_symmetric_padding.1}
  #allocation0 [shape = 'u32[]', space=smem, size = 0x4, offset = 0x4, fixed_abs, tag = 'smem constant byte address 0x4 - core index']
  #allocation1 [shape = 'u32[144,128]{1,0:T(1,128)}', space=vmem, size = 0x12000, scoped, tag = 'internal scratch']
  %s0 = inlined_call_operand.vmem [shape: f32[8,48], index: 0, kind: input, shape index: {}]
  %s1 = inlined_call_operand.vmem [shape: f32[2,48,256], index: 1, kind: input, shape index: {}]
  %s2 = inlined_call_operand.vmem [shape: f32[2,8,256], index: 2, kind: output, shape index: {}]
  %s3 = sld [smem:[#allocation0]]
  $region41: #{model_with_symmetric_padding.1} parent=0
    _
  %s5 = ssub.s32 1, %s3
  %s6 = scalar_select 0, %s5, %s3
  loop: start=0, step=1, limit=4
  $region2: #{model_with_symmetric_padding.1} parent=0 // loop_pre_header
    _
  $region3: #{model_with_symmetric_padding.1} parent=0 // loop_header
    %s8 = sphi 0, %s12
    %p9 = scmp.ge.s32.totalorder %s8, 4
    %s16 = sphi 0, %s16
    %s18 = sphi 0, %s16
    %s19 = sphi 0, %s18
    %s33 = sphi 0, %s19
    %s39 = sphi 0, %s41
    %s42 = sphi 0, %s39
    %s43 = sphi 0, %s42
    %s59 = sphi 0, %s43
    %s65 = sphi 0, %s67
    %s68 = sphi 0, %s65
    %s69 = sphi 0, %s68
    %s85 = sphi 0, %s69
  $region4: #{model_with_symmetric_padding.1} parent=0 // loop_header_branch
    %11 = sbr.rel (%p9) target = $region8
  $region5: #{model_with_symmetric_padding.1} parent=0 // loop_body
    %s13 = ssub.s32 %s8, 1
    %s14 = ssub.s32 %s8, 2
    %s15 = sadd.s32 %s8, 1
    %s17 = sadd.s32 %s16, 1
    %p20 = scmp.eq.s32.totalorder %s8, 1
    %p21 = scmp.ne.s32.totalorder %s16, %s18
    %p22 = scmp.eq.s32.totalorder %s8, 0
    %p23 = por %p21, %p22
    %p24 = scmp.ne.s32.totalorder %s16, %s18
    %p25 = scmp.eq.s32.totalorder %s13, 1
    %p26 = por %p24, %p25
    %p27 = scmp.ne.s32.totalorder %s18, %s19
    %p28 = scmp.eq.s32.totalorder %s13, 0
    %p29 = por %p27, %p28
    %p30 = scmp.ne.s32.totalorder %s18, %s19
    %p31 = scmp.eq.s32.totalorder %s14, 1
    %p32 = por %p30, %p31
    %p34 = scmp.ne.s32.totalorder %s19, %s33
    %p35 = scmp.eq.s32.totalorder %s14, 0
    %p36 = por %p34, %p35
    %s37 = ssub.s32 %s8, %s15
    %p38 = scmp.eq.s32.totalorder %s37, 0
    %s40 = sadd.s32 %s39, 1
    %s41 = scalar_select %p38, %s39, %s40
    %p44 = pneg %p38
    %p45 = scmp.eq.s32.totalorder %s8, 1
    %p46 = por %p44, %p45
    %p47 = scmp.ne.s32.totalorder %s39, %s42
    %p48 = scmp.eq.s32.totalorder %s8, 0
    %p49 = por %p47, %p48
    %p50 = scmp.ne.s32.totalorder %s39, %s42
    %p51 = scmp.eq.s32.totalorder %s13, 1
    %p52 = por %p50, %p51
    %p53 = scmp.ne.s32.totalorder %s42, %s43
    %p54 = scmp.eq.s32.totalorder %s13, 0
    %p55 = por %p53, %p54
    %p56 = scmp.ne.s32.totalorder %s42, %s43
    %p57 = scmp.eq.s32.totalorder %s14, 1
    %p58 = por %p56, %p57
    %p60 = scmp.ne.s32.totalorder %s43, %s59
    %p61 = scmp.eq.s32.totalorder %s14, 0
    %p62 = por %p60, %p61
    %s63 = ssub.s32 %s8, %s15
    %p64 = scmp.eq.s32.totalorder %s63, 0
    %s66 = sadd.s32 %s65, 1
    %s67 = scalar_select %p64, %s65, %s66
    %p70 = pneg %p64
    %p71 = scmp.eq.s32.totalorder %s8, 1
    %p72 = por %p70, %p71
    %p73 = scmp.ne.s32.totalorder %s65, %s68
    %p74 = scmp.eq.s32.totalorder %s8, 0
    %p75 = por %p73, %p74
    %p76 = scmp.ne.s32.totalorder %s65, %s68
    %p77 = scmp.eq.s32.totalorder %s13, 1
    %p78 = por %p76, %p77
    %p79 = scmp.ne.s32.totalorder %s68, %s69
    %p80 = scmp.eq.s32.totalorder %s13, 0
    %p81 = por %p79, %p80
    %p82 = scmp.ne.s32.totalorder %s68, %s69
    %p83 = scmp.eq.s32.totalorder %s14, 1
    %p84 = por %p82, %p83
    %p86 = scmp.ne.s32.totalorder %s69, %s85
    %p87 = scmp.eq.s32.totalorder %s14, 0
    %p88 = por %p86, %p87
    %p89 = scmp.le.s32.totalorder 1, %s8
    %p90 = scmp.lt.s32.totalorder %s8, 3
    %p91 = pnand %p89, %p90
    %p92 = pneg %p91
    // Predicated region
    $region9: #{model_with_symmetric_padding.1} parent=5 // pred_check
      _
    $region10: #{model_with_symmetric_padding.1} parent=5 // pred_check_branch
      %94 = sbr.rel (%p91) target = $region12
    $region11: #{model_with_symmetric_padding.1} parent=5 // pred_region
      %s95 = ssub.s32 %s8, 1
      // Predicated region
      $region13: #{model_with_symmetric_padding.1} parent=11 // pred_check
        %p96 = pneg %p29
      $region14: #{model_with_symmetric_padding.1} parent=11 // pred_check_branch
        %98 = sbr.rel (%p96) target = $region16
      $region15: #{model_with_symmetric_padding.1} parent=11 // pred_region
        _
      $region16: #{model_with_symmetric_padding.1} parent=11 // pred_fallthru
        _
    $region12: #{model_with_symmetric_padding.1} parent=5 // pred_fallthru
      _
    %p99 = scmp.lt.s32.totalorder %s8, 2
    // Predicated region
    $region17: #{model_with_symmetric_padding.1} parent=5 // pred_check
      %p100 = pneg %p99
    $region18: #{model_with_symmetric_padding.1} parent=5 // pred_check_branch
      %102 = sbr.rel (%p100) target = $region20
    $region19: #{model_with_symmetric_padding.1} parent=5 // pred_region
      // Predicated region
      $region21: #{model_with_symmetric_padding.1} parent=19 // pred_check
        %p103 = pneg %p49
      $region22: #{model_with_symmetric_padding.1} parent=19 // pred_check_branch
        %105 = sbr.rel (%p103) target = $region24
      $region23: #{model_with_symmetric_padding.1} parent=19 // pred_region
        %p106 = scmp.lt.s32.totalorder %s8, 1
        %s107 = scalar_select %p106, %s8, 1
        %s108 = smul.addr %s107, 12
        %s109 = smul.addr %s108, 8
        %s110 = scalar_lea.vmem %s1, %s109
      $region24: #{model_with_symmetric_padding.1} parent=19 // pred_fallthru
        _
    $region20: #{model_with_symmetric_padding.1} parent=5 // pred_fallthru
      _
    %p111 = scmp.le.s32.totalorder 1, %s8
    %p112 = scmp.lt.s32.totalorder %s8, 3
    %p113 = pnand %p111, %p112
    %p114 = pneg %p113
    // Predicated region
    $region25: #{model_with_symmetric_padding.1} parent=5 // pred_check
      _
    $region26: #{model_with_symmetric_padding.1} parent=5 // pred_check_branch
      %116 = sbr.rel (%p113) target = $region28
    $region27: #{model_with_symmetric_padding.1} parent=5 // pred_region
      %s117 = ssub.s32 %s8, 1
      %p118 = pneg %p29
      %p119 = pneg %p26
      %p120 = scmp.lt.s32.totalorder %s13, 1
      %s121 = scalar_select %p120, %s13, 1
      %s122 = smul.addr %s121, 12
      %s123 = smul.addr %s122, 8
      %s124 = scalar_lea.vmem %s1, %s123
      %p125 = pneg %p55
      %p126 = pneg %p52
      %p127 = pneg %p81
      %p128 = pneg %p78
      %p129 = scmp.lt.s32.totalorder %s13, 1
      %s130 = scalar_select %p129, %s13, 1
      %s131 = smul.addr %s130, 2
      %s132 = smul.addr %s131, 8
      %s133 = scalar_lea.vmem %s2, %s132
      %p134 = scmp.lt.s32.totalorder %s13, 1
      %s135 = scalar_select %p134, %s13, 1
      %s136 = smul.addr %s135, 12
      %s137 = smul.addr %s136, 8
      %s138 = scalar_lea.vmem %s1, %s137
      %p139 = scmp.lt.s32.totalorder %s13, 1
      %s140 = scalar_select %p139, %s13, 1
      %s141 = smul.addr %s140, 2
      %s142 = smul.addr %s141, 8
      %s143 = scalar_lea.vmem %s2, %s142
      %v144 = vld [vmem:[%s0] sm:$0xff]
      %v145 = vld [vmem:[%s138] sm:$0xff]
      %v146 = vld [vmem:[%s138 + $0x8] sm:$0xff]
      %v147 = vld [vmem:[%s138 + $0x10] sm:$0xff]
      %v148 = vld [vmem:[%s138 + $0x18] sm:$0xff]
      %v149 = vld [vmem:[%s138 + $0x20] sm:$0xff]
      %v150 = vld [vmem:[%s138 + $0x28] sm:$0xff]
      %v151 = vld [vmem:[%s138 + $0x30] sm:$0xff]
      %v152 = vld [vmem:[%s138 + $0x38] sm:$0xff]
      %v153 = vld [vmem:[%s138 + $0x40] sm:$0xff]
      %v154 = vld [vmem:[%s138 + $0x48] sm:$0xff]
      %v155 = vld [vmem:[%s138 + $0x50] sm:$0xff]
      %v156 = vld [vmem:[%s138 + $0x58] sm:$0xff]
      %vm157 = vcmask 392192
      %v159 = vsel %vm157, %v144, 0
      %161 = vmatprep.subr.mxu0 %v146
      %162 = vmatpush1.msra.mxu0 %v145
      %163 = vmatprep.subr.mxu0 %v148
      %164 = vmatpush1.msra.mxu0 %v147
      %165 = vmatprep.subr.mxu0 %v150
      %166 = vmatpush1.msra.mxu0 %v149
      %167 = vmatprep.subr.mxu0 %v152
      %168 = vmatpush1.msra.mxu0 %v151
      %169 = vmatprep.subr.mxu0 %v154
      %170 = vmatpush1.msra.mxu0 %v153
      %171 = vmatprep.subr.mxu0 %v156
      %172 = vmatpush1.msra.mxu0 %v155
      %173 = vmatprep.subr.mxu0 0.0
      %174 = vmatpush1.msra.mxu0 0.0
      %175 = vmatprep.subr.mxu0 0.0
      %176 = vmatpush1.msra.mxu0 0.0
      %177 = vmatprep.subr.mxu0 0.0
      %178 = vmatpush1.msra.mxu0 0.0
      %179 = vmatprep.subr.mxu0 0.0
      %180 = vmatpush1.msra.mxu0 0.0
      %181 = vmatprep.subr.mxu0 0.0
      %182 = vmatpush1.msra.mxu0 0.0
      %183 = vmatprep.subr.mxu0 0.0
      %184 = vmatpush1.msra.mxu0 0.0
      %185 = vmatprep.subr.mxu0 0.0
      %186 = vmatpush1.msra.mxu0 0.0
      %187 = vmatprep.subr.mxu0 0.0
      %188 = vmatpush1.msra.mxu0 0.0
      %189 = vmatprep.subr.mxu0 0.0
      %190 = vmatpush1.msra.mxu0 0.0
      %191 = vmatprep.subr.mxu0 0.0
      %192 = vmatpush1.msra.mxu0 0.0
      %193 = vmatprep.subr.mxu0 0.0
      %194 = vmatpush1.msra.mxu0 0.0
      %195 = vmatprep.subr.mxu0 0.0
      %196 = vmatpush1.msra.mxu0 0.0
      %197 = vmatprep.subr.mxu0 0.0
      %198 = vmatpush1.msra.mxu0 0.0
      %199 = vmatprep.subr.mxu0 0.0
      %200 = vmatpush1.msra.mxu0 0.0
      %201 = vmatprep.subr.mxu0 0.0
      %202 = vmatpush1.msra.mxu0 0.0
      %203 = vmatprep.subr.mxu0 0.0
      %204 = vmatpush1.msra.mxu0 0.0
      %205 = vmatprep.subr.mxu0 0.0
      %206 = vmatpush1.msra.mxu0 0.0
      %207 = vmatprep.subr.mxu0 0.0
      %208 = vmatpush1.msra.mxu0 0.0
      %209 = vmatprep.subr.mxu0 0.0
      %210 = vmatpush1.msra.mxu0 0.0
      %211 = vmatprep.subr.mxu0 0.0
      %212 = vmatpush1.msra.mxu0 0.0
      %213 = vmatprep.subr.mxu0 0.0
      %214 = vmatpush1.msra.mxu0 0.0
      %215 = vmatprep.subr.mxu0 0.0
      %216 = vmatpush1.msra.mxu0 0.0
      %217 = vmatprep.subr.mxu0 0.0
      %218 = vmatpush1.msra.mxu0 0.0
      %219 = vmatprep.subr.mxu0 0.0
      %220 = vmatpush1.msra.mxu0 0.0
      %221 = vmatprep.subr.mxu0 0.0
      %222 = vmatpush1.msra.mxu0 0.0
      %223 = vmatprep.subr.mxu0 0.0
      %224 = vmatpush1.msra.mxu0 0.0
      %225 = vmatprep.mubr.f32.mxu0 0.0
      %226 = vmatmul.mubr.f32.gmra.mrb[0].mxu0 %v159
      %v227 = vpop.f32.mrb[0].mxu0
      %v228 = vadd.f32 0.0, %v227
      %v229 = vpop.f32.mrb[0].mxu0
      %v230 = vadd.f32 0.0, %v229
      %231 = vdwg.mxu0
      %232 = vst [vmem:[%s143] sm:$0xff] %v228
      %233 = vst [vmem:[%s143 + $0x8] sm:$0xff] %v230
      %p234 = scmp.lt.s32.totalorder %s13, 1
      %s235 = scalar_select %p234, %s13, 1
      %s236 = smul.addr %s235, 2
      %s237 = smul.addr %s236, 8
      %s238 = scalar_lea.vmem %s2, %s237
      // Predicated region
      $region29: #{model_with_symmetric_padding.1} parent=27 // pred_check
        %p239 = pneg %p78
      $region30: #{model_with_symmetric_padding.1} parent=27 // pred_check_branch
        %241 = sbr.rel (%p239) target = $region32
      $region31: #{model_with_symmetric_padding.1} parent=27 // pred_region
        _
      $region32: #{model_with_symmetric_padding.1} parent=27 // pred_fallthru
        _
    $region28: #{model_with_symmetric_padding.1} parent=5 // pred_fallthru
      _
    %p242 = scmp.le.s32.totalorder 2, %s8
    // Predicated region
    $region33: #{model_with_symmetric_padding.1} parent=5 // pred_check
      %p243 = pneg %p242
    $region34: #{model_with_symmetric_padding.1} parent=5 // pred_check_branch
      %245 = sbr.rel (%p243) target = $region36
    $region35: #{model_with_symmetric_padding.1} parent=5 // pred_region
      %s246 = ssub.s32 %s8, 2
      // Predicated region
      $region37: #{model_with_symmetric_padding.1} parent=35 // pred_check
        %p247 = pneg %p84
      $region38: #{model_with_symmetric_padding.1} parent=35 // pred_check_branch
        %249 = sbr.rel (%p247) target = $region40
      $region39: #{model_with_symmetric_padding.1} parent=35 // pred_region
        %p250 = scmp.lt.s32.totalorder %s14, 1
        %s251 = scalar_select %p250, %s14, 1
        %s252 = smul.addr %s251, 2
        %s253 = smul.addr %s252, 8
        %s254 = scalar_lea.vmem %s2, %s253
      $region40: #{model_with_symmetric_padding.1} parent=35 // pred_fallthru
        _
    $region36: #{model_with_symmetric_padding.1} parent=5 // pred_fallthru
      _
  $region6: #{model_with_symmetric_padding.1} parent=0 // loop_footer
    %s12 = sadd.s32 1, %s8
  $region7: #{model_with_symmetric_padding.1} parent=0 // loop_footer_branch
    %7 = sbr.rel target = $region3
  $region8: #{model_with_symmetric_padding.1} parent=0 // loop_exit
    _

</llo_original>
